<compile_context>
chip_gen: v7x
topology: tpu7x:2x2x1
jax: 0.10.0
libtpu: 0.0.40
codegen_flags: <defaults>
</compile_context>

<pallas_src>
import jax
import jax.numpy as jnp
from jax.experimental import pallas as pl
from jax.experimental.pallas import tpu as pltpu


# --------------------------------- Pallas kernel --------------------------------- #
def _make_adain_kernel(HW):
    eps = 1e-5
    inv_hw = 1.0 / HW
    inv_hw_m1 = 1.0 / (HW - 1)  # torch.std default: unbiased (ddof=1)

    def kernel(x_ref, y_ref, o_ref):
        # Block shape (nb, cb, HW): channels on sublanes, H*W on the 128-lane axis.
        x = x_ref[...].astype(jnp.float32)
        y = y_ref[...].astype(jnp.float32)

        # x statistics: two-pass (mean, then centered second moment).  The centered
        # value is exactly what the output needs, so nothing extra is paid for it.
        mean_x = jnp.sum(x, axis=-1, keepdims=True) * inv_hw            # (nb, cb, 1)
        var_x = jnp.sum((x - mean_x) * (x - mean_x), axis=-1, keepdims=True) * inv_hw_m1
        std_x = jnp.sqrt(var_x) + eps

        # y statistics: one pass (sum, sum of squares); the centered y is never needed.
        sum_y = jnp.sum(y, axis=-1, keepdims=True)                      # (nb, cb, 1)
        sum_yy = jnp.sum(y * y, axis=-1, keepdims=True)
        mean_y = sum_y * inv_hw
        var_y = jnp.maximum(sum_yy - sum_y * mean_y, 0.0) * inv_hw_m1
        std_y = jnp.sqrt(var_y) + eps

        # Exact divide: scale is only (nb, cb, 1) elements, so the cost is negligible
        # and the numerics match the PyTorch reference tightly.
        scale = std_y / std_x
        o_ref[...] = ((x - mean_x) * scale + mean_y).astype(o_ref.dtype)

    return kernel


# ------------------------------- block-size heuristic ---------------------------- #
def _choose_block(N, C, HW, itemsize, target_bytes=2 << 20):
    """Pick (nb, cb) for blocks of shape (nb, cb, HW).

    - cb stays C unless one batch row exceeds the budget and C can be tiled by
      multiples of 8 (sublane constraint).
    - nb is the largest divisor of N keeping the block under `target_bytes`, but we
      keep >= 2 batch grid steps when N >= 2 so v7x's two TensorCores both get work.
    """
    row_bytes = C * HW * itemsize

    cb = C
    if C % 8 == 0:
        while (cb > 8 and cb * HW * itemsize > target_bytes
               and cb % 2 == 0 and (cb // 2) % 8 == 0):
            cb //= 2

    nb = 1
    if cb == C:
        max_nb = max(1, target_bytes // max(row_bytes, 1))
        if N >= 2:
            max_nb = min(max_nb, max(1, N // 2))   # >= 2 parallel steps for v7x
        max_nb = max(1, min(int(max_nb), N))
        for d in range(max_nb, 0, -1):             # largest divisor of N <= max_nb
            if N % d == 0:
                nb = d
                break
    return nb, cb


# ----------------------------------- wrapper ------------------------------------ #
def adain(x_nchw, y_nchw):
    """AdaIN forward. x, y: (N, C, H, W), same shape. Returns (N, C, H, W)."""
    N, C, H, W = x_nchw.shape
    assert y_nchw.shape == x_nchw.shape, "x and y must have the same shape"
    HW = H * W
    assert HW > 1, "unbiased std (ddof=1) needs at least 2 spatial elements"

    # Free, contiguous reshape: NCHW -> (N, C, H*W); H*W lands on the lane axis.
    x = x_nchw.reshape(N, C, HW)
    y = y_nchw.reshape(N, C, HW)

    itemsize = jnp.dtype(x_nchw.dtype).itemsize
    nb, cb = _choose_block(N, C, HW, itemsize)
    grid = (N // nb, C // cb)

    out = pl.pallas_call(
        _make_adain_kernel(HW),
        out_shape=jax.ShapeDtypeStruct((N, C, HW), x_nchw.dtype),
        grid=grid,
        in_specs=[
            pl.BlockSpec((nb, cb, HW), lambda n, c: (n, c, 0)),
            pl.BlockSpec((nb, cb, HW), lambda n, c: (n, c, 0)),
        ],
        out_specs=pl.BlockSpec((nb, cb, HW), lambda n, c: (n, c, 0)),
        # Both grid axes are fully independent -> "parallel" lets v7x shard them
        # across its two TensorCores; no effect on single-TC v5e/v6e.
        compiler_params=pltpu.CompilerParams(
            dimension_semantics=("parallel", "parallel"),
            vmem_limit_bytes=32 << 20,
        ),
    )(x, y)
    return out.reshape(N, C, H, W)


# ------------------------- plain-JAX reference (correctness) --------------------- #
def ref_adain(x, y):
    eps = 1e-5
    mean_x = jnp.mean(x, axis=(2, 3), keepdims=True)
    mean_y = jnp.mean(y, axis=(2, 3), keepdims=True)
    std_x = jnp.std(x, axis=(2, 3), ddof=1, keepdims=True) + eps
    std_y = jnp.std(y, axis=(2, 3), ddof=1, keepdims=True) + eps
    return (x - mean_x) / std_x * std_y + mean_y


if __name__ == "__main__":
    N, C, H, W = 2, 4, 16, 16
    key = jax.random.PRNGKey(0)
    kx, ky = jax.random.split(key)
    x = jax.random.normal(kx, (N, C, H, W), jnp.float32)
    y = 0.7 * jax.random.normal(ky, (N, C, H, W), jnp.float32) + 0.3

    out = jax.block_until_ready(adain(x, y))
    ref = ref_adain(x, y)

    assert out.shape == (N, C, H, W)
    # Exact divide inside the kernel -> tight tolerance.
    assert jnp.allclose(out, ref, rtol=1e-4, atol=1e-4), (
        float(jnp.max(jnp.abs(out - ref))))
    print("KERNEL_OK")
</pallas_src>

<mosaic_0001>
module attributes {stable_mosaic.version = 11 : i64} {
  func.func @kernel(%arg0: i32, %arg1: i32, %arg2: memref<1x4x256xf32, #tpu.memory_space<vmem>>, %arg3: memref<1x4x256xf32, #tpu.memory_space<vmem>>, %arg4: memref<1x4x256xf32, #tpu.memory_space<vmem>>) attributes {dimension_semantics = [#tpu.dimension_semantics<parallel>, #tpu.dimension_semantics<parallel>], iteration_bounds = array<i64: 2, 1>, scalar_prefetch = 0 : i64, scratch_operands = 0 : i64, tpu.core_type = #tpu.core_type<tc>, window_params = [{transform_indices = @transform_0, window_bounds = array<i64: 1, 4, 256>}, {transform_indices = @transform_1, window_bounds = array<i64: 1, 4, 256>}, {transform_indices = @transform_2, window_bounds = array<i64: 1, 4, 256>}]} {
    %c0 = arith.constant 0 : index
    %c0_0 = arith.constant 0 : index
    %c0_1 = arith.constant 0 : index
    %0 = vector.load %arg2[%c0, %c0_0, %c0_1] : memref<1x4x256xf32, #tpu.memory_space<vmem>>, vector<1x4x256xf32>
    %c0_2 = arith.constant 0 : index
    %c0_3 = arith.constant 0 : index
    %c0_4 = arith.constant 0 : index
    %1 = vector.load %arg3[%c0_2, %c0_3, %c0_4] : memref<1x4x256xf32, #tpu.memory_space<vmem>>, vector<1x4x256xf32>
    %cst = arith.constant dense<0.000000e+00> : vector<1x4xf32>
    %2 = vector.multi_reduction <add>, %0, %cst [2] : vector<1x4x256xf32> to vector<1x4xf32>
    %3 = vector.shape_cast %2 : vector<1x4xf32> to vector<1x4x1xf32>
    %cst_5 = arith.constant 3.906250e-03 : f32
    %4 = vector.broadcast %cst_5 : f32 to vector<1x4x1xf32>
    %5 = arith.mulf %3, %4 : vector<1x4x1xf32>
    %6 = vector.broadcast %5 : vector<1x4x1xf32> to vector<1x4x256xf32>
    %7 = arith.subf %0, %6 : vector<1x4x256xf32>
    %8 = vector.broadcast %5 : vector<1x4x1xf32> to vector<1x4x256xf32>
    %9 = arith.subf %0, %8 : vector<1x4x256xf32>
    %10 = arith.mulf %7, %9 : vector<1x4x256xf32>
    %cst_6 = arith.constant dense<0.000000e+00> : vector<1x4xf32>
    %11 = vector.multi_reduction <add>, %10, %cst_6 [2] : vector<1x4x256xf32> to vector<1x4xf32>
    %12 = vector.shape_cast %11 : vector<1x4xf32> to vector<1x4x1xf32>
    %cst_7 = arith.constant 0.00392156886 : f32
    %13 = vector.broadcast %cst_7 : f32 to vector<1x4x1xf32>
    %14 = arith.mulf %12, %13 : vector<1x4x1xf32>
    %15 = math.sqrt %14 : vector<1x4x1xf32>
    %cst_8 = arith.constant 9.99999974E-6 : f32
    %16 = vector.broadcast %cst_8 : f32 to vector<1x4x1xf32>
    %17 = arith.addf %15, %16 : vector<1x4x1xf32>
    %cst_9 = arith.constant dense<0.000000e+00> : vector<1x4xf32>
    %18 = vector.multi_reduction <add>, %1, %cst_9 [2] : vector<1x4x256xf32> to vector<1x4xf32>
    %19 = vector.shape_cast %18 : vector<1x4xf32> to vector<1x4x1xf32>
    %20 = arith.mulf %1, %1 : vector<1x4x256xf32>
    %cst_10 = arith.constant dense<0.000000e+00> : vector<1x4xf32>
    %21 = vector.multi_reduction <add>, %20, %cst_10 [2] : vector<1x4x256xf32> to vector<1x4xf32>
    %22 = vector.shape_cast %21 : vector<1x4xf32> to vector<1x4x1xf32>
    %cst_11 = arith.constant 3.906250e-03 : f32
    %23 = vector.broadcast %cst_11 : f32 to vector<1x4x1xf32>
    %24 = arith.mulf %19, %23 : vector<1x4x1xf32>
    %25 = arith.mulf %19, %24 : vector<1x4x1xf32>
    %26 = arith.subf %22, %25 : vector<1x4x1xf32>
    %cst_12 = arith.constant 0.000000e+00 : f32
    %27 = vector.broadcast %cst_12 : f32 to vector<1x4x1xf32>
    %28 = arith.maximumf %26, %27 : vector<1x4x1xf32>
    %cst_13 = arith.constant 0.00392156886 : f32
    %29 = vector.broadcast %cst_13 : f32 to vector<1x4x1xf32>
    %30 = arith.mulf %28, %29 : vector<1x4x1xf32>
    %31 = math.sqrt %30 : vector<1x4x1xf32>
    %cst_14 = arith.constant 9.99999974E-6 : f32
    %32 = vector.broadcast %cst_14 : f32 to vector<1x4x1xf32>
    %33 = arith.addf %31, %32 : vector<1x4x1xf32>
    %34 = arith.divf %33, %17 : vector<1x4x1xf32>
    %35 = vector.broadcast %5 : vector<1x4x1xf32> to vector<1x4x256xf32>
    %36 = arith.subf %0, %35 : vector<1x4x256xf32>
    %37 = vector.broadcast %34 : vector<1x4x1xf32> to vector<1x4x256xf32>
    %38 = arith.mulf %36, %37 : vector<1x4x256xf32>
    %39 = vector.broadcast %24 : vector<1x4x1xf32> to vector<1x4x256xf32>
    %40 = arith.addf %38, %39 : vector<1x4x256xf32>
    %c0_15 = arith.constant 0 : index
    %c0_16 = arith.constant 0 : index
    %c0_17 = arith.constant 0 : index
    %41 = vector.load %arg4[%c0_15, %c0_16, %c0_17] : memref<1x4x256xf32, #tpu.memory_space<vmem>>, vector<1x4x256xf32>
    tpu.vector_store %arg4[%c0_15, %c0_16, %c0_17], %40 {strides = array<i32>} : memref<1x4x256xf32, #tpu.memory_space<vmem>>, vector<1x4x256xf32>,
    return
  }
  func.func @transform_0(%arg0: i32, %arg1: i32) -> (i32, i32, i32) {
    %c0_i32 = arith.constant 0 : i32
    %c0_i32_0 = arith.constant 0 : i32
    return %arg0, %arg1, %c0_i32 : i32, i32, i32
  }
  func.func @transform_1(%arg0: i32, %arg1: i32) -> (i32, i32, i32) {
    %c0_i32 = arith.constant 0 : i32
    %c0_i32_0 = arith.constant 0 : i32
    return %arg0, %arg1, %c0_i32 : i32, i32, i32
  }
  func.func @transform_2(%arg0: i32, %arg1: i32) -> (i32, i32, i32) {
    %c0_i32 = arith.constant 0 : i32
    %c0_i32_0 = arith.constant 0 : i32
    return %arg0, %arg1, %c0_i32 : i32, i32, i32
  }
}

</mosaic_0001>

<llo_original>
// kernel: tpu_custom_call.1
$region0: #{tpu_custom_call.1}
  #allocation0 [shape = 'u32[]', space=smem, size = 0x4, offset = 0x4, fixed_abs, tag = 'smem constant byte address 0x4 - core index']
  #allocation1 [shape = 'u32[144,128]{1,0:T(1,128)}', space=vmem, size = 0x12000, scoped, tag = 'internal scratch']
  %s0 = inlined_call_operand.hbm [shape: f32[2,4,256], index: 0, kind: input, shape index: {}]
  %s1 = inlined_call_operand.hbm [shape: f32[2,4,256], index: 1, kind: input, shape index: {}]
  %s2 = inlined_call_operand.hbm [shape: f32[2,4,256], index: 2, kind: output, shape index: {}]
  %s3 = sld [smem:[#allocation0]]
  $region49: #{tpu_custom_call.1} parent=0
    _
  %s5 = ssub.s32 1, %s3
  %s6 = scalar_select 0, %s5, %s3
  $region1: #{tpu_custom_call.1} parent=0
    #allocation2 [shape = 'u8[8192]{0}', space=vmem, size = 0x2000, scoped, tag = 'input window, operand 0']
    #allocation3 [shape = 's32[2]{0}', space=sflag, size = 0x8, scoped, tag = 'scoped memory for tpu_custom_call.1']
    #allocation4 [shape = 's32[2]{0}', space=sflag, size = 0x8, scoped, tag = 'scoped memory for tpu_custom_call.1']
    #allocation5 [shape = 'u8[8192]{0}', space=vmem, size = 0x2000, scoped, tag = 'input window, operand 1']
    #allocation6 [shape = 's32[2]{0}', space=sflag, size = 0x8, scoped, tag = 'scoped memory for tpu_custom_call.1']
    #allocation7 [shape = 'u8[8192]{0}', space=vmem, size = 0x2000, scoped, tag = 'output window, operand 0']
    %7 = vsyncpa [#allocation3], 0
    %s8 = scalar_lea.sflag [#allocation3], 1
    %9 = vsyncpa %s8, 0
    %10 = vsyncpa [#allocation6], 0
    %s11 = scalar_lea.sflag [#allocation6], 1
    %12 = vsyncpa %s11, 0
    %13 = vsyncpa [#allocation4], 0
    %s14 = scalar_lea.sflag [#allocation4], 1
    %15 = vsyncpa %s14, 0
    loop: start=0, step=1, limit=4
    $region2: #{tpu_custom_call.1} parent=1 // loop_pre_header
      _
    $region3: #{tpu_custom_call.1} parent=1 // loop_header
      %s17 = sphi 0, %s21
      %p18 = scmp.ge.s32.totalorder %s17, 4
      %s24 = sphi 0, %s36
      %s25 = sphi 0, %s32
      %s26 = sphi 0, %s24
      %s27 = sphi 0, %s25
      %s28 = sphi 0, %s26
      %s29 = sphi 0, %s27
      %s41 = sphi 0, %s43
      %s44 = sphi 0, %s41
      %s45 = sphi 0, %s44
      %s61 = sphi 0, %s45
      %s69 = sphi 0, %s71
      %s72 = sphi 0, %s69
      %s73 = sphi 0, %s72
      %s89 = sphi 0, %s73
      %s97 = sphi 0, %s99
      %s100 = sphi 0, %s97
      %s101 = sphi 0, %s100
      %s117 = sphi 0, %s101
    $region4: #{tpu_custom_call.1} parent=1 // loop_header_branch
      %20 = sbr.rel (%p18) target = $region8
    $region5: #{tpu_custom_call.1} parent=1 // loop_body
      %s22 = ssub.s32 %s17, 1
      %s23 = ssub.s32 %s17, 2
      %s30 = sadd.s32 1, %s25
      %p31 = scmp.ge.s32.totalorder %s30, 1
      %s32 = scalar_select %p31, 0, %s30
      %s33 = sadd.s32 1, %s24
      %s34 = scalar_select %p31, %s33, %s24
      %p35 = scmp.ge.s32.totalorder %s34, 2
      %s36 = scalar_select %p35, 0, %s34
      %s37 = ssub.s32 %s24, %s36
      %s38 = ssub.s32 %s25, %s32
      %s39 = sor.u32 %s37, %s38
      %p40 = scmp.eq.s32.totalorder %s39, 0
      %s42 = sadd.s32 %s41, 1
      %s43 = scalar_select %p40, %s41, %s42
      %p46 = pneg %p40
      %p47 = scmp.eq.s32.totalorder %s17, 1
      %p48 = por %p46, %p47
      %p49 = scmp.ne.s32.totalorder %s41, %s44
      %p50 = scmp.eq.s32.totalorder %s17, 0
      %p51 = por %p49, %p50
      %p52 = scmp.ne.s32.totalorder %s41, %s44
      %p53 = scmp.eq.s32.totalorder %s22, 1
      %p54 = por %p52, %p53
      %p55 = scmp.ne.s32.totalorder %s44, %s45
      %p56 = scmp.eq.s32.totalorder %s22, 0
      %p57 = por %p55, %p56
      %p58 = scmp.ne.s32.totalorder %s44, %s45
      %p59 = scmp.eq.s32.totalorder %s23, 1
      %p60 = por %p58, %p59
      %p62 = scmp.ne.s32.totalorder %s45, %s61
      %p63 = scmp.eq.s32.totalorder %s23, 0
      %p64 = por %p62, %p63
      %s65 = ssub.s32 %s24, %s36
      %s66 = ssub.s32 %s25, %s32
      %s67 = sor.u32 %s65, %s66
      %p68 = scmp.eq.s32.totalorder %s67, 0
      %s70 = sadd.s32 %s69, 1
      %s71 = scalar_select %p68, %s69, %s70
      %p74 = pneg %p68
      %p75 = scmp.eq.s32.totalorder %s17, 1
      %p76 = por %p74, %p75
      %p77 = scmp.ne.s32.totalorder %s69, %s72
      %p78 = scmp.eq.s32.totalorder %s17, 0
      %p79 = por %p77, %p78
      %p80 = scmp.ne.s32.totalorder %s69, %s72
      %p81 = scmp.eq.s32.totalorder %s22, 1
      %p82 = por %p80, %p81
      %p83 = scmp.ne.s32.totalorder %s72, %s73
      %p84 = scmp.eq.s32.totalorder %s22, 0
      %p85 = por %p83, %p84
      %p86 = scmp.ne.s32.totalorder %s72, %s73
      %p87 = scmp.eq.s32.totalorder %s23, 1
      %p88 = por %p86, %p87
      %p90 = scmp.ne.s32.totalorder %s73, %s89
      %p91 = scmp.eq.s32.totalorder %s23, 0
      %p92 = por %p90, %p91
      %s93 = ssub.s32 %s24, %s36
      %s94 = ssub.s32 %s25, %s32
      %s95 = sor.u32 %s93, %s94
      %p96 = scmp.eq.s32.totalorder %s95, 0
      %s98 = sadd.s32 %s97, 1
      %s99 = scalar_select %p96, %s97, %s98
      %p102 = pneg %p96
      %p103 = scmp.eq.s32.totalorder %s17, 1
      %p104 = por %p102, %p103
      %p105 = scmp.ne.s32.totalorder %s97, %s100
      %p106 = scmp.eq.s32.totalorder %s17, 0
      %p107 = por %p105, %p106
      %p108 = scmp.ne.s32.totalorder %s97, %s100
      %p109 = scmp.eq.s32.totalorder %s22, 1
      %p110 = por %p108, %p109
      %p111 = scmp.ne.s32.totalorder %s100, %s101
      %p112 = scmp.eq.s32.totalorder %s22, 0
      %p113 = por %p111, %p112
      %p114 = scmp.ne.s32.totalorder %s100, %s101
      %p115 = scmp.eq.s32.totalorder %s23, 1
      %p116 = por %p114, %p115
      %p118 = scmp.ne.s32.totalorder %s101, %s117
      %p119 = scmp.eq.s32.totalorder %s23, 0
      %p120 = por %p118, %p119
      %p121 = scmp.le.s32.totalorder 1, %s17
      %p122 = scmp.lt.s32.totalorder %s17, 3
      %p123 = pnand %p121, %p122
      %p124 = pneg %p123
      // Predicated region
      $region9: #{tpu_custom_call.1} parent=5 // pred_check
        _
      $region10: #{tpu_custom_call.1} parent=5 // pred_check_branch
        %126 = sbr.rel (%p123) target = $region12
      $region11: #{tpu_custom_call.1} parent=5 // pred_region
        %s127 = ssub.s32 %s17, 1
      $region12: #{tpu_custom_call.1} parent=5 // pred_fallthru
        _
      %p128 = scmp.lt.s32.totalorder %s17, 2
      // Predicated region
      $region13: #{tpu_custom_call.1} parent=5 // pred_check
        %p129 = pneg %p128
      $region14: #{tpu_custom_call.1} parent=5 // pred_check_branch
        %131 = sbr.rel (%p129) target = $region16
      $region15: #{tpu_custom_call.1} parent=5 // pred_region
        // Predicated region
        $region17: #{tpu_custom_call.1} parent=15 // pred_check
          %p132 = pneg %p51
        $region18: #{tpu_custom_call.1} parent=15 // pred_check_branch
          %134 = sbr.rel (%p132) target = $region20
        $region19: #{tpu_custom_call.1} parent=15 // pred_region
          %s135 = sand.u32 %s41, 1
          %s136 = scalar_lea.sflag [#allocation3], %s135
          %s137 = sand.u32 %s41, 1
          %s138 = smul.addr %s137, 8
          %s139 = scalar_lea.vmem [#allocation2], %s138
          %s141 = ssub.s32 128, 128
          %142 = vsyncadd %s136, %s141
          %s143 = smul.addr %s25, 2
          %s144 = smul.addr %s24, 2
          %s145 = sadd.s32 %s143, %s144
          %s146 = smul.addr %s145, 64
          %s147 = scalar_lea.hbm %s0, %s146
          %s149 = sshll.u32 %s139, 4
          %s150 = int_to_ptr.vmem [resolvable:$true] %s149
          %152 = dma.hbm_to_vmem [thread:$0]  %s147, 128, %s150, %s136
        $region20: #{tpu_custom_call.1} parent=15 // pred_fallthru
          _
        // Predicated region
        $region21: #{tpu_custom_call.1} parent=15 // pred_check
          %p153 = pneg %p79
        $region22: #{tpu_custom_call.1} parent=15 // pred_check_branch
          %155 = sbr.rel (%p153) target = $region24
        $region23: #{tpu_custom_call.1} parent=15 // pred_region
          %s156 = sand.u32 %s69, 1
          %s157 = scalar_lea.sflag [#allocation6], %s156
          %s158 = sand.u32 %s69, 1
          %s159 = smul.addr %s158, 8
          %s160 = scalar_lea.vmem [#allocation5], %s159
          %s162 = ssub.s32 128, 128
          %163 = vsyncadd %s157, %s162
          %s164 = smul.addr %s25, 2
          %s165 = smul.addr %s24, 2
          %s166 = sadd.s32 %s164, %s165
          %s167 = smul.addr %s166, 64
          %s168 = scalar_lea.hbm %s1, %s167
          %s170 = sshll.u32 %s160, 4
          %s171 = int_to_ptr.vmem [resolvable:$true] %s170
          %173 = dma.hbm_to_vmem [thread:$0]  %s168, 128, %s171, %s157
        $region24: #{tpu_custom_call.1} parent=15 // pred_fallthru
          _
      $region16: #{tpu_custom_call.1} parent=5 // pred_fallthru
        _
      %p174 = scmp.le.s32.totalorder 1, %s17
      %p175 = scmp.lt.s32.totalorder %s17, 3
      %p176 = pnand %p174, %p175
      %p177 = pneg %p176
      // Predicated region
      $region25: #{tpu_custom_call.1} parent=5 // pred_check
        _
      $region26: #{tpu_custom_call.1} parent=5 // pred_check_branch
        %179 = sbr.rel (%p176) target = $region28
      $region27: #{tpu_custom_call.1} parent=5 // pred_region
        %s180 = ssub.s32 %s17, 1
        %s181 = sand.u32 %s44, 1
        %s182 = scalar_lea.sflag [#allocation3], %s181
        %s183 = sand.u32 %s44, 1
        %s184 = smul.addr %s183, 8
        %s185 = scalar_lea.vmem [#allocation2], %s184
        // Predicated region
        $region29: #{tpu_custom_call.1} parent=27 // pred_check
          %p186 = pneg %p57
        $region30: #{tpu_custom_call.1} parent=27 // pred_check_branch
          %188 = sbr.rel (%p186) target = $region32
        $region31: #{tpu_custom_call.1} parent=27 // pred_region
          %189 = dma.done %s182, 128
        $region32: #{tpu_custom_call.1} parent=27 // pred_fallthru
          _
        %s190 = sand.u32 %s72, 1
        %s191 = scalar_lea.sflag [#allocation6], %s190
        %s192 = sand.u32 %s72, 1
        %s193 = smul.addr %s192, 8
        %s194 = scalar_lea.vmem [#allocation5], %s193
        // Predicated region
        $region33: #{tpu_custom_call.1} parent=27 // pred_check
          %p195 = pneg %p85
        $region34: #{tpu_custom_call.1} parent=27 // pred_check_branch
          %197 = sbr.rel (%p195) target = $region36
        $region35: #{tpu_custom_call.1} parent=27 // pred_region
          %198 = dma.done %s191, 128
        $region36: #{tpu_custom_call.1} parent=27 // pred_fallthru
          _
        %s199 = sand.u32 %s44, 1
        %s200 = scalar_lea.sflag [#allocation3], %s199
        %s201 = sand.u32 %s44, 1
        %s202 = smul.addr %s201, 8
        %s203 = scalar_lea.vmem [#allocation2], %s202
        %p204 = pneg %p57
        %p205 = pneg %p54
        %s206 = sand.u32 %s72, 1
        %s207 = scalar_lea.sflag [#allocation6], %s206
        %s208 = sand.u32 %s72, 1
        %s209 = smul.addr %s208, 8
        %s210 = scalar_lea.vmem [#allocation5], %s209
        %p211 = pneg %p85
        %p212 = pneg %p82
        %p213 = pneg %p113
        %p214 = pneg %p110
        %s215 = sand.u32 %s100, 1
        %s216 = scalar_lea.sflag [#allocation4], %s215
        %s217 = sand.u32 %s100, 1
        %s218 = smul.addr %s217, 8
        %s219 = scalar_lea.vmem [#allocation7], %s218
        %v220 = vld [vmem:[%s185] sm:$0xff]
        %v221 = vld [vmem:[%s194] sm:$0xff]
        %v223 = vcombine.high %v220, %v220
        %vm225 = vcmask 1043456
        %v226 = vsel %vm225, %v220, 0.0
        %v227 = vsel %vm225, %v223, 0.0
        %v228 = vadd.f32 %v226, %v227
        %229 = vadd.xlane.f32.xlu0 %v228
        %v230 = vpop.xlane.xlu0 %229
        %v231 = vmul.f32 %v230, 0.00390625
        %v234 = vunpack.c.l.s4 839922192
        %v235 = vunpack.c.0.s8 %v234
        %v236 = vlaneseq
        %v237 = vshrl.u32 %v236, 7
        %v238 = vsub.s32 %v235, %v237
        %v239 = vrot.slane %v231, %v238
        %v241 = vsub.f32 %v220, %v239
        %v242 = vmul.f32 %v241, %v241
        %v244 = vcombine.high %v242, %v242
        %v246 = vsel %vm225, %v242, 0.0
        %v247 = vsel %vm225, %v244, 0.0
        %v248 = vadd.f32 %v246, %v247
        %249 = vadd.xlane.f32.xlu0 %v248
        %v250 = vpop.xlane.xlu0 %249
        %v251 = vmul.f32 %v250, 0.003921569
        %v252 = vrsqrt.pop %v251
        %v253 = vmul.f32 %v251, %v252
        %vm254 = vcmp.eq.f32.partialorder %v251, inf
        %v255 = vsel %vm254, %v251, %v253
        %vm256 = vcmp.eq.f32.partialorder %v251, 0.0
        %v257 = vand.u32 %v251, 2147483648
        %v258 = vsel %vm256, %v257, %v255
        %v259 = vadd.f32 %v258, 1e-05
        %v261 = vcombine.high %v221, %v221
        %v263 = vsel %vm225, %v221, 0.0
        %v264 = vsel %vm225, %v261, 0.0
        %v265 = vadd.f32 %v263, %v264
        %266 = vadd.xlane.f32.xlu0 %v265
        %v267 = vpop.xlane.xlu0 %266
        %v268 = vmul.f32 %v221, %v221
        %v270 = vcombine.high %v268, %v268
        %v272 = vsel %vm225, %v268, 0.0
        %v273 = vsel %vm225, %v270, 0.0
        %v274 = vadd.f32 %v272, %v273
        %275 = vadd.xlane.f32.xlu0 %v274
        %v276 = vpop.xlane.xlu0 %275
        %v277 = vmul.f32 %v267, 0.00390625
        %v278 = vmul.f32 %v267, %v277
        %v279 = vsub.f32 %v276, %v278
        %v280 = vmax.f32 %v279, 0.0
        %v281 = vmul.f32 %v280, 0.003921569
        %v282 = vrsqrt.pop %v281
        %v283 = vmul.f32 %v281, %v282
        %vm284 = vcmp.eq.f32.partialorder %v281, inf
        %v285 = vsel %vm284, %v281, %v283
        %vm286 = vcmp.eq.f32.partialorder %v281, 0.0
        %v287 = vand.u32 %v281, 2147483648
        %v288 = vsel %vm286, %v287, %v285
        %v289 = vadd.f32 %v288, 1e-05
        %v290 = vrcp.pop %v259
        %v291 = vmul.f32 %v289, %v290
        %v294 = vunpack.c.l.s4 839922192
        %v295 = vunpack.c.0.s8 %v294
        %v296 = vlaneseq
        %v297 = vshrl.u32 %v296, 7
        %v298 = vsub.s32 %v295, %v297
        %v299 = vrot.slane %v291, %v298
        %v301 = vmul.f32 %v241, %v299
        %v304 = vunpack.c.l.s4 839922192
        %v305 = vunpack.c.0.s8 %v304
        %v306 = vlaneseq
        %v307 = vshrl.u32 %v306, 7
        %v308 = vsub.s32 %v305, %v307
        %v309 = vrot.slane %v277, %v308
        %v311 = vadd.f32 %v301, %v309
        %312 = vst [vmem:[%s219] sm:$0xff] %v311
        %s313 = sand.u32 %s100, 1
        %s314 = scalar_lea.sflag [#allocation4], %s313
        %s315 = sand.u32 %s100, 1
        %s316 = smul.addr %s315, 8
        %s317 = scalar_lea.vmem [#allocation7], %s316
        // Predicated region
        $region37: #{tpu_custom_call.1} parent=27 // pred_check
          %p318 = pneg %p110
        $region38: #{tpu_custom_call.1} parent=27 // pred_check_branch
          %320 = sbr.rel (%p318) target = $region40
        $region39: #{tpu_custom_call.1} parent=27 // pred_region
          %s322 = ssub.s32 128, 128
          %323 = vsyncadd %s314, %s322
          %s324 = smul.addr %s27, 2
          %s325 = smul.addr %s26, 2
          %s326 = sadd.s32 %s324, %s325
          %s327 = smul.addr %s326, 64
          %s328 = scalar_lea.hbm %s2, %s327
          %s330 = sshll.u32 %s317, 4
          %s331 = int_to_ptr.vmem [resolvable:$true] %s330
          %333 = dma.vmem_to_hbm [thread:$0]  %s331, 128, %s328, %s314
        $region40: #{tpu_custom_call.1} parent=27 // pred_fallthru
          _
      $region28: #{tpu_custom_call.1} parent=5 // pred_fallthru
        _
      %p334 = scmp.le.s32.totalorder 2, %s17
      // Predicated region
      $region41: #{tpu_custom_call.1} parent=5 // pred_check
        %p335 = pneg %p334
      $region42: #{tpu_custom_call.1} parent=5 // pred_check_branch
        %337 = sbr.rel (%p335) target = $region44
      $region43: #{tpu_custom_call.1} parent=5 // pred_region
        %s338 = ssub.s32 %s17, 2
        // Predicated region
        $region45: #{tpu_custom_call.1} parent=43 // pred_check
          %p339 = pneg %p116
        $region46: #{tpu_custom_call.1} parent=43 // pred_check_branch
          %341 = sbr.rel (%p339) target = $region48
        $region47: #{tpu_custom_call.1} parent=43 // pred_region
          %s342 = sand.u32 %s101, 1
          %s343 = scalar_lea.sflag [#allocation4], %s342
          %s344 = sand.u32 %s101, 1
          %s345 = smul.addr %s344, 8
          %s346 = scalar_lea.vmem [#allocation7], %s345
          %347 = dma.done %s343, 128
        $region48: #{tpu_custom_call.1} parent=43 // pred_fallthru
          _
      $region44: #{tpu_custom_call.1} parent=5 // pred_fallthru
        _
    $region6: #{tpu_custom_call.1} parent=1 // loop_footer
      %s21 = sadd.s32 1, %s17
    $region7: #{tpu_custom_call.1} parent=1 // loop_footer_branch
      %16 = sbr.rel target = $region3
    $region8: #{tpu_custom_call.1} parent=1 // loop_exit
      _
    %348 = vsyncpa [#allocation3], 1
    %s349 = scalar_lea.sflag [#allocation3], 1
    %350 = vsyncpa %s349, 1
    %351 = vsyncpa [#allocation6], 1
    %s352 = scalar_lea.sflag [#allocation6], 1
    %353 = vsyncpa %s352, 1
    %354 = vsyncpa [#allocation4], 1
    %s355 = scalar_lea.sflag [#allocation4], 1
    %356 = vsyncpa %s355, 1

</llo_original>
